<compile_context>
chip_gen: v7x
topology: tpu7x:2x2x1
jax: 0.10.0
libtpu: 0.0.40
codegen_flags: <defaults>
</compile_context>

<pallas_src>
import functools

import jax
import jax.numpy as jnp
from jax.experimental import pallas as pl
from jax.experimental.pallas import tpu as pltpu

HIDDEN = 32          # hidden_size (small, per instructions; module default is 256)
OUTPUT = 16          # output_size (vocab)
MAX_LENGTH = 10      # max_length (encoder slots)
SEG = 128            # lane width of each packed weight/bias segment (one vreg row)
NSEG = 5             # [attn | comb_emb | gh_r | gh_z | gh_n] / [wca | W_ir | W_iz | W_in | W_out]
PACKW = NSEG * SEG   # 640


def _attn_decoder_kernel(
    tok_ref,   # (T,) int32  SMEM (scalar prefetch): decoder input token per step
    h0_ref,    # (1, H)      initial hidden state
    enc_ref,   # (L, H)      encoder_outputs (VMEM-resident across all steps)
    w_ref,     # (3H, 640)   rows 0:2H  -> block-diag RHS for the [onehot|hid] dot
               #             rows 2H:3H -> [wca | W_ir | W_iz | W_in | W_out] (128-lane segs)
    b_ref,     # (2, 640)    row 0 -> bias of dot #1, row 1 -> bias of dot #2 / output
    out_ref,   # (1, 8, 128) row 0 = logits(V), row 1 = h_new(H), row 2 = attn_w(L)
    h_scr,     # (1, H)      VMEM scratch: hidden-state carry across grid steps
):
    H, L, V = HIDDEN, MAX_LENGTH, OUTPUT
    t = pl.program_id(0)

    @pl.when(t == 0)
    def _():
        h_scr[...] = h0_ref[...]

    hid = h_scr[...]                                               # (1, H)

    # ---- embedding lookup fused into dot #1 via a one-hot row selector ----
    tok = tok_ref[t]
    onehot = (jax.lax.broadcasted_iota(jnp.int32, (1, H), 1) == tok).astype(jnp.float32)
    xh = jnp.concatenate([onehot, hid], axis=1)                    # (1, 2H)

    # ---- fused dot #1: attn logits | combine(emb) part | GRU hidden-side gates ----
    g1 = jnp.dot(xh, w_ref[0:2 * H, :],
                 preferred_element_type=jnp.float32) + b_ref[0:1, :]   # (1, 640)

    # attention softmax over the L encoder slots (exact divide)
    logits = g1[:, 0:L]
    m = jnp.max(logits, axis=1, keepdims=True)
    e = jnp.exp(logits - m)
    attn_w = e / jnp.sum(e, axis=1, keepdims=True)                 # (1, L)

    # attn_applied = bmm(attn_w, encoder_outputs)
    attn_applied = jnp.dot(attn_w, enc_ref[...],
                           preferred_element_type=jnp.float32)     # (1, H)

    # attn_combine(cat(emb, attn_applied)) then ReLU
    comb = g1[:, SEG:SEG + H] + jnp.dot(
        attn_applied, w_ref[2 * H:3 * H, 0:H],
        preferred_element_type=jnp.float32)
    x = jnp.maximum(comb, 0.0)                                     # (1, H) GRU input

    # ---- GRU cell (PyTorch gate order r, z, n); all segments 128-lane aligned ----
    g2 = jnp.dot(x, w_ref[2 * H:3 * H, SEG:4 * SEG],
                 preferred_element_type=jnp.float32) + b_ref[1:2, SEG:4 * SEG]  # (1, 384)
    gh_r = g1[:, 2 * SEG:2 * SEG + H]
    gh_z = g1[:, 3 * SEG:3 * SEG + H]
    gh_n = g1[:, 4 * SEG:4 * SEG + H]                              # includes b_hn
    r = jax.nn.sigmoid(g2[:, 0:H] + gh_r)
    z = jax.nn.sigmoid(g2[:, SEG:SEG + H] + gh_z)
    n = jnp.tanh(g2[:, 2 * SEG:2 * SEG + H] + r * gh_n)
    h_new = (1.0 - z) * n + z * hid                                # (1, H)

    # ---- output projection ----
    out = jnp.dot(h_new, w_ref[2 * H:3 * H, 4 * SEG:4 * SEG + V],
                  preferred_element_type=jnp.float32) + b_ref[1:2, 4 * SEG:4 * SEG + V]

    # carry hidden state; row-packed, offset-0 stores (no lane rotates)
    h_scr[...] = h_new
    out_ref[...] = jnp.zeros_like(out_ref)
    out_ref[0:1, 0:1, 0:V] = out.reshape(1, 1, V)
    out_ref[0:1, 1:2, 0:H] = h_new.reshape(1, 1, H)
    out_ref[0:1, 2:3, 0:L] = attn_w.reshape(1, 1, L)


def attn_decoder_decode(params, tokens, hidden, encoder_outputs):
    """Fused multi-step decode: ONE pallas_call, grid over T decode steps.

    tokens:           (T,) int32 decoder input ids
    hidden:           (1, 1, H) f32 initial hidden
    encoder_outputs:  (L, H) f32
    returns (outputs (T, V), hiddens (T, H), attn_weights (T, L))
    """
    H, L, V = HIDDEN, MAX_LENGTH, OUTPUT
    T = tokens.shape[0]

    h0 = hidden.reshape(1, H).astype(jnp.float32)
    enc = encoder_outputs.astype(jnp.float32)
    tokens = tokens.astype(jnp.int32)

    grid_spec = pltpu.PrefetchScalarGridSpec(
        num_scalar_prefetch=1,
        grid=(T,),
        in_specs=[
            pl.BlockSpec((1, H), lambda t, tok: (0, 0)),          # h0 (constant block)
            pl.BlockSpec((L, H), lambda t, tok: (0, 0)),          # encoder_outputs
            pl.BlockSpec((3 * H, PACKW), lambda t, tok: (0, 0)),  # weight slab (resident)
            pl.BlockSpec((2, PACKW), lambda t, tok: (0, 0)),      # bias slab (resident)
        ],
        out_specs=pl.BlockSpec((1, 8, SEG), lambda t, tok: (t, 0, 0)),
        scratch_shapes=[pltpu.VMEM((1, H), jnp.float32)],
    )

    packed = pl.pallas_call(
        _attn_decoder_kernel,
        grid_spec=grid_spec,
        out_shape=jax.ShapeDtypeStruct((T, 8, SEG), jnp.float32),
        compiler_params=pltpu.CompilerParams(
            dimension_semantics=("arbitrary",)),  # sequential: hidden carries across steps
    )(tokens, h0, enc, params["w"], params["b"])

    outs = packed[:, 0, :V]      # (T, V)
    hiddens = packed[:, 1, :H]   # (T, H)
    attns = packed[:, 2, :L]     # (T, L)
    return outs, hiddens, attns


def attn_decoder_forward(params, token, hidden, encoder_outputs):
    """Single decode step (exact semantics of the PyTorch module's forward())."""
    H = HIDDEN
    tokens = jnp.reshape(token, (1,)).astype(jnp.int32)
    outs, hiddens, attns = attn_decoder_decode(params, tokens, hidden, encoder_outputs)
    return outs[0:1], hiddens[0:1].reshape(1, 1, H), attns[0:1]


def init_raw_params(key):
    """Deterministic params in the PyTorch module's native shapes."""
    H, L, V = HIDDEN, MAX_LENGTH, OUTPUT
    ks = jax.random.split(key, 11)
    s = 0.1

    def rn(k, shape):
        return (s * jax.random.normal(k, shape)).astype(jnp.float32)

    return {
        "embedding": rn(ks[0], (V, H)),          # nn.Embedding(V, H)
        "attn_w": rn(ks[1], (L, 2 * H)),         # nn.Linear(2H, L)
        "attn_b": rn(ks[2], (1, L)),
        "comb_w": rn(ks[3], (H, 2 * H)),         # nn.Linear(2H, H)
        "comb_b": rn(ks[4], (1, H)),
        "w_ih": rn(ks[5], (3 * H, H)),           # nn.GRU(H, H)
        "w_hh": rn(ks[6], (3 * H, H)),
        "b_ih": rn(ks[7], (1, 3 * H)),
        "b_hh": rn(ks[8], (1, 3 * H)),
        "out_w": rn(ks[9], (V, H)),              # nn.Linear(H, V)
        "out_b": rn(ks[10], (1, V)),
    }


def pack_params(raw):
    """Host-side fusion: embedding table folded in, all weights/biases -> 2 slabs.

    Weight slab (3H, 640), each logical segment on a 128-lane boundary:
      rows 0:2H  (RHS of [onehot|hid] dot):
        seg0 attn logits: [emb_tbl@Wa_e ; Wa_h]     seg1 combine(emb): [emb_tbl@Wc_e ; 0]
        seg2 [0 ; W_hr]   seg3 [0 ; W_hz]   seg4 [0 ; W_hn]
      rows 2H:3H:
        seg0 Wc_a   seg1 W_ir   seg2 W_iz   seg3 W_in   seg4 W_out
    Bias slab (2, 640): row0 = [attn_b | comb_b | 0 | 0 | b_hn],
                        row1 = [0 | b_ir+b_hr | b_iz+b_hz | b_in | out_b]
    """
    H, L, V = HIDDEN, MAX_LENGTH, OUTPUT
    f32 = jnp.float32

    wa_e = raw["attn_w"][:, :H].T          # (H, L)
    wa_h = raw["attn_w"][:, H:].T          # (H, L)
    wc_e = raw["comb_w"][:, :H].T          # (H, H)
    wc_a = raw["comb_w"][:, H:].T          # (H, H)
    wir, wiz, win = (raw["w_ih"][i * H:(i + 1) * H].T for i in range(3))
    whr, whz, whn = (raw["w_hh"][i * H:(i + 1) * H].T for i in range(3))
    bir, biz, bin_ = (raw["b_ih"][:, i * H:(i + 1) * H] for i in range(3))
    bhr, bhz, bhn = (raw["b_hh"][:, i * H:(i + 1) * H] for i in range(3))

    assert V <= H  # one-hot selector width is H lanes
    emb_pad = jnp.zeros((H, H), f32).at[:V, :].set(raw["embedding"])

    w1 = jnp.zeros((2 * H, PACKW), f32)
    w1 = w1.at[0:H, 0:L].set(emb_pad @ wa_e)
    w1 = w1.at[H:2 * H, 0:L].set(wa_h)
    w1 = w1.at[0:H, SEG:SEG + H].set(emb_pad @ wc_e)
    w1 = w1.at[H:2 * H, 2 * SEG:2 * SEG + H].set(whr)
    w1 = w1.at[H:2 * H, 3 * SEG:3 * SEG + H].set(whz)
    w1 = w1.at[H:2 * H, 4 * SEG:4 * SEG + H].set(whn)

    w2 = jnp.zeros((H, PACKW), f32)
    w2 = w2.at[:, 0:H].set(wc_a)
    w2 = w2.at[:, SEG:SEG + H].set(wir)
    w2 = w2.at[:, 2 * SEG:2 * SEG + H].set(wiz)
    w2 = w2.at[:, 3 * SEG:3 * SEG + H].set(win)
    w2 = w2.at[:, 4 * SEG:4 * SEG + V].set(raw["out_w"].T)

    b1 = jnp.zeros((1, PACKW), f32)
    b1 = b1.at[:, 0:L].set(raw["attn_b"])
    b1 = b1.at[:, SEG:SEG + H].set(raw["comb_b"])
    b1 = b1.at[:, 4 * SEG:4 * SEG + H].set(bhn)

    b2 = jnp.zeros((1, PACKW), f32)
    b2 = b2.at[:, SEG:SEG + H].set(bir + bhr)
    b2 = b2.at[:, 2 * SEG:2 * SEG + H].set(biz + bhz)
    b2 = b2.at[:, 3 * SEG:3 * SEG + H].set(bin_)
    b2 = b2.at[:, 4 * SEG:4 * SEG + V].set(raw["out_b"])

    return {
        "w": jnp.concatenate([w1, w2], axis=0),   # (3H, 640)
        "b": jnp.concatenate([b1, b2], axis=0),   # (2, 640)
    }


def reference_decode(raw, tokens, hidden, encoder_outputs):
    """Pure-JAX step-by-step reference mirroring the PyTorch forward()."""
    H = HIDDEN
    hid = hidden.reshape(1, H)
    outs, attns = [], []
    for t in range(int(tokens.shape[0])):
        emb = raw["embedding"][tokens[t]].reshape(1, H)
        logits = jnp.concatenate([emb, hid], 1) @ raw["attn_w"].T + raw["attn_b"]
        attn_w = jax.nn.softmax(logits, axis=1)
        attn_applied = attn_w @ encoder_outputs
        x = jax.nn.relu(
            jnp.concatenate([emb, attn_applied], 1) @ raw["comb_w"].T + raw["comb_b"])
        gi = x @ raw["w_ih"].T + raw["b_ih"]
        gh = hid @ raw["w_hh"].T + raw["b_hh"]
        r = jax.nn.sigmoid(gi[:, :H] + gh[:, :H])
        z = jax.nn.sigmoid(gi[:, H:2 * H] + gh[:, H:2 * H])
        n = jnp.tanh(gi[:, 2 * H:] + r * gh[:, 2 * H:])
        hid = (1.0 - z) * n + z * hid
        outs.append(hid @ raw["out_w"].T + raw["out_b"])
        attns.append(attn_w)
    return jnp.concatenate(outs, 0), hid, jnp.concatenate(attns, 0)


if __name__ == "__main__":
    key = jax.random.PRNGKey(0)
    k_params, k_hid, k_enc, k_tok = jax.random.split(key, 4)

    raw = init_raw_params(k_params)
    params = pack_params(raw)

    T = 4
    tokens = jax.random.randint(k_tok, (T,), 0, OUTPUT, dtype=jnp.int32)
    hidden0 = jax.random.normal(k_hid, (1, 1, HIDDEN), jnp.float32)
    encoder_outputs = jax.random.normal(k_enc, (MAX_LENGTH, HIDDEN), jnp.float32)

    # fused multi-step decode: weights DMA'd once, hidden carried in VMEM scratch
    decode = jax.jit(functools.partial(attn_decoder_decode, params))
    outs, hiddens, attns = decode(tokens, hidden0, encoder_outputs)
    jax.block_until_ready((outs, hiddens, attns))

    assert outs.shape == (T, OUTPUT)
    assert hiddens.shape == (T, HIDDEN)
    assert attns.shape == (T, MAX_LENGTH)
    assert bool(jnp.all(jnp.abs(jnp.sum(attns, axis=1) - 1.0) < 1e-5))

    ref_outs, ref_hid, ref_attns = reference_decode(raw, tokens, hidden0, encoder_outputs)
    assert jnp.allclose(outs, ref_outs, rtol=1e-4, atol=1e-4)
    assert jnp.allclose(hiddens[-1].reshape(1, HIDDEN), ref_hid, rtol=1e-4, atol=1e-4)
    assert jnp.allclose(attns, ref_attns, rtol=1e-4, atol=1e-4)

    # single decode step with the PyTorch module's forward() signature (T=1)
    fwd = jax.jit(functools.partial(attn_decoder_forward, params))
    out1, hid1, attn1 = fwd(tokens[0], hidden0, encoder_outputs)
    jax.block_until_ready((out1, hid1, attn1))
    assert out1.shape == (1, OUTPUT)
    assert hid1.shape == (1, 1, HIDDEN)
    assert attn1.shape == (1, MAX_LENGTH)
    assert jnp.allclose(out1, ref_outs[0:1], rtol=1e-4, atol=1e-4)
    assert jnp.allclose(attn1, ref_attns[0:1], rtol=1e-4, atol=1e-4)

    print("KERNEL_OK")
</pallas_src>

<mosaic_0001>
module attributes {stable_mosaic.version = 11 : i64} {
  func.func @_attn_decoder_kernel(%arg0: i32, %arg1: memref<4xi32, #tpu.memory_space<smem>>, %arg2: memref<1x32xf32, #tpu.memory_space<vmem>>, %arg3: memref<10x32xf32, #tpu.memory_space<vmem>>, %arg4: memref<96x640xf32, #tpu.memory_space<vmem>>, %arg5: memref<2x640xf32, #tpu.memory_space<vmem>>, %arg6: memref<1x8x128xf32, #tpu.memory_space<vmem>>, %arg7: memref<1x32xf32, #tpu.memory_space<vmem>>) attributes {dimension_semantics = [#tpu.dimension_semantics<arbitrary>], iteration_bounds = array<i64: 4>, scalar_prefetch = 1 : i64, scratch_operands = 1 : i64, tpu.core_type = #tpu.core_type<tc>, window_params = [{pipeline_mode = #tpu.pipeline_mode<synchronous>, transform_indices = @transform_0, window_bounds = array<i64: 1, 32>}, {pipeline_mode = #tpu.pipeline_mode<synchronous>, transform_indices = @transform_1, window_bounds = array<i64: 10, 32>}, {pipeline_mode = #tpu.pipeline_mode<synchronous>, transform_indices = @transform_2, window_bounds = array<i64: 96, 640>}, {pipeline_mode = #tpu.pipeline_mode<synchronous>, transform_indices = @transform_3, window_bounds = array<i64: 2, 640>}, {transform_indices = @transform_4, window_bounds = array<i64: 1, 8, 128>}]} {
    %c0_i32 = arith.constant 0 : i32
    %0 = arith.cmpi eq, %arg0, %c0_i32 : i32
    %1 = arith.extui %0 : i1 to i32
    %c0_i32_0 = arith.constant 0 : i32
    %2 = arith.cmpi ne, %1, %c0_i32_0 : i32
    scf.if %2 {
      %c0_38 = arith.constant 0 : index
      %c0_39 = arith.constant 0 : index
      %77 = vector.load %arg2[%c0_38, %c0_39] : memref<1x32xf32, #tpu.memory_space<vmem>>, vector<1x32xf32>
      %c0_40 = arith.constant 0 : index
      %c0_41 = arith.constant 0 : index
      %78 = vector.load %arg7[%c0_40, %c0_41] : memref<1x32xf32, #tpu.memory_space<vmem>>, vector<1x32xf32>
      tpu.vector_store %arg7[%c0_40, %c0_41], %77 {strides = array<i32>} : memref<1x32xf32, #tpu.memory_space<vmem>>, vector<1x32xf32>,
    } else {
    }
    %c0 = arith.constant 0 : index
    %c0_1 = arith.constant 0 : index
    %3 = vector.load %arg7[%c0, %c0_1] : memref<1x32xf32, #tpu.memory_space<vmem>>, vector<1x32xf32>
    %4 = arith.index_cast %arg0 : i32 to index
    %5 = memref.load %arg1[%4] : memref<4xi32, #tpu.memory_space<smem>>
    %6 = tpu.iota {dimensions = array<i32: 1>} : vector<1x32xi32>
    %7 = vector.broadcast %5 : i32 to vector<1x32xi32>
    %8 = arith.cmpi eq, %6, %7 : vector<1x32xi32>
    %9 = arith.extui %8 : vector<1x32xi1> to vector<1x32xi32>
    %10 = arith.sitofp %9 : vector<1x32xi32> to vector<1x32xf32>
    %11 = tpu.concatenate %10, %3 in 1 : vector<1x32xf32>, vector<1x32xf32> -> vector<1x64xf32>
    %c0_2 = arith.constant 0 : index
    %c0_3 = arith.constant 0 : index
    %12 = vector.load %arg4[%c0_2, %c0_3] : memref<96x640xf32, #tpu.memory_space<vmem>>, vector<64x640xf32>
    %cst = arith.constant dense<0.000000e+00> : vector<1x640xf32>
    %13 = tpu.matmul %11, %12, %cst {dimension_numbers = #tpu.dot_dimension_numbers<[1], [0], [0], [1], [0, 0, 1, 1], [], []>} : vector<1x64xf32>, vector<64x640xf32>, vector<1x640xf32> -> vector<1x640xf32>
    %c0_4 = arith.constant 0 : index
    %c0_5 = arith.constant 0 : index
    %14 = vector.load %arg5[%c0_4, %c0_5] : memref<2x640xf32, #tpu.memory_space<vmem>>, vector<1x640xf32>
    %15 = arith.addf %13, %14 : vector<1x640xf32>
    %16 = vector.extract_strided_slice %15 {offsets = [0, 0], sizes = [1, 10], strides = [1, 1]} : vector<1x640xf32> to vector<1x10xf32>
    %cst_6 = arith.constant dense<0xFF800000> : vector<1xf32>
    %17 = vector.multi_reduction <maximumf>, %16, %cst_6 [1] : vector<1x10xf32> to vector<1xf32>
    %18 = vector.shape_cast %17 : vector<1xf32> to vector<1x1xf32>
    %19 = vector.broadcast %18 : vector<1x1xf32> to vector<1x10xf32>
    %20 = arith.subf %16, %19 : vector<1x10xf32>
    %21 = math.exp %20 : vector<1x10xf32>
    %cst_7 = arith.constant dense<0.000000e+00> : vector<1xf32>
    %22 = vector.multi_reduction <add>, %21, %cst_7 [1] : vector<1x10xf32> to vector<1xf32>
    %23 = vector.shape_cast %22 : vector<1xf32> to vector<1x1xf32>
    %24 = vector.broadcast %23 : vector<1x1xf32> to vector<1x10xf32>
    %25 = arith.divf %21, %24 : vector<1x10xf32>
    %c0_8 = arith.constant 0 : index
    %c0_9 = arith.constant 0 : index
    %26 = vector.load %arg3[%c0_8, %c0_9] : memref<10x32xf32, #tpu.memory_space<vmem>>, vector<10x32xf32>
    %cst_10 = arith.constant dense<0.000000e+00> : vector<1x32xf32>
    %27 = tpu.matmul %25, %26, %cst_10 {dimension_numbers = #tpu.dot_dimension_numbers<[1], [0], [0], [1], [0, 0, 1, 1], [], []>} : vector<1x10xf32>, vector<10x32xf32>, vector<1x32xf32> -> vector<1x32xf32>
    %28 = vector.extract_strided_slice %15 {offsets = [0, 128], sizes = [1, 32], strides = [1, 1]} : vector<1x640xf32> to vector<1x32xf32>
    %c64 = arith.constant 64 : index
    %c0_11 = arith.constant 0 : index
    %29 = vector.load %arg4[%c64, %c0_11] : memref<96x640xf32, #tpu.memory_space<vmem>>, vector<32x32xf32>
    %cst_12 = arith.constant dense<0.000000e+00> : vector<1x32xf32>
    %30 = tpu.matmul %27, %29, %cst_12 {dimension_numbers = #tpu.dot_dimension_numbers<[1], [0], [0], [1], [0, 0, 1, 1], [], []>} : vector<1x32xf32>, vector<32x32xf32>, vector<1x32xf32> -> vector<1x32xf32>
    %31 = arith.addf %28, %30 : vector<1x32xf32>
    %cst_13 = arith.constant 0.000000e+00 : f32
    %32 = vector.broadcast %cst_13 : f32 to vector<1x32xf32>
    %33 = arith.maximumf %31, %32 : vector<1x32xf32>
    %c64_14 = arith.constant 64 : index
    %c128 = arith.constant 128 : index
    %34 = vector.load %arg4[%c64_14, %c128] : memref<96x640xf32, #tpu.memory_space<vmem>>, vector<32x384xf32>
    %cst_15 = arith.constant dense<0.000000e+00> : vector<1x384xf32>
    %35 = tpu.matmul %33, %34, %cst_15 {dimension_numbers = #tpu.dot_dimension_numbers<[1], [0], [0], [1], [0, 0, 1, 1], [], []>} : vector<1x32xf32>, vector<32x384xf32>, vector<1x384xf32> -> vector<1x384xf32>
    %c1 = arith.constant 1 : index
    %c128_16 = arith.constant 128 : index
    %36 = vector.load %arg5[%c1, %c128_16] : memref<2x640xf32, #tpu.memory_space<vmem>>, vector<1x384xf32>
    %37 = arith.addf %35, %36 : vector<1x384xf32>
    %38 = vector.extract_strided_slice %15 {offsets = [0, 256], sizes = [1, 32], strides = [1, 1]} : vector<1x640xf32> to vector<1x32xf32>
    %39 = vector.extract_strided_slice %15 {offsets = [0, 384], sizes = [1, 32], strides = [1, 1]} : vector<1x640xf32> to vector<1x32xf32>
    %40 = vector.extract_strided_slice %15 {offsets = [0, 512], sizes = [1, 32], strides = [1, 1]} : vector<1x640xf32> to vector<1x32xf32>
    %41 = vector.extract_strided_slice %37 {offsets = [0, 0], sizes = [1, 32], strides = [1, 1]} : vector<1x384xf32> to vector<1x32xf32>
    %42 = arith.addf %41, %38 : vector<1x32xf32>
    %43 = arith.negf %42 : vector<1x32xf32>
    %44 = math.exp %43 : vector<1x32xf32>
    %cst_17 = arith.constant 1.000000e+00 : f32
    %45 = vector.broadcast %cst_17 : f32 to vector<1x32xf32>
    %46 = arith.addf %45, %44 : vector<1x32xf32>
    %47 = arith.divf %45, %46 : vector<1x32xf32>
    %48 = vector.extract_strided_slice %37 {offsets = [0, 128], sizes = [1, 32], strides = [1, 1]} : vector<1x384xf32> to vector<1x32xf32>
    %49 = arith.addf %48, %39 : vector<1x32xf32>
    %50 = arith.negf %49 : vector<1x32xf32>
    %51 = math.exp %50 : vector<1x32xf32>
    %cst_18 = arith.constant 1.000000e+00 : f32
    %52 = vector.broadcast %cst_18 : f32 to vector<1x32xf32>
    %53 = arith.addf %52, %51 : vector<1x32xf32>
    %54 = arith.divf %52, %53 : vector<1x32xf32>
    %55 = vector.extract_strided_slice %37 {offsets = [0, 256], sizes = [1, 32], strides = [1, 1]} : vector<1x384xf32> to vector<1x32xf32>
    %56 = arith.mulf %47, %40 : vector<1x32xf32>
    %57 = arith.addf %55, %56 : vector<1x32xf32>
    %58 = math.tanh %57 : vector<1x32xf32>
    %cst_19 = arith.constant 1.000000e+00 : f32
    %59 = vector.broadcast %cst_19 : f32 to vector<1x32xf32>
    %60 = arith.subf %59, %54 : vector<1x32xf32>
    %61 = arith.mulf %60, %58 : vector<1x32xf32>
    %62 = arith.mulf %54, %3 : vector<1x32xf32>
    %63 = arith.addf %61, %62 : vector<1x32xf32>
    %c64_20 = arith.constant 64 : index
    %c512 = arith.constant 512 : index
    %64 = vector.load %arg4[%c64_20, %c512] : memref<96x640xf32, #tpu.memory_space<vmem>>, vector<32x16xf32>
    %cst_21 = arith.constant dense<0.000000e+00> : vector<1x16xf32>
    %65 = tpu.matmul %63, %64, %cst_21 {dimension_numbers = #tpu.dot_dimension_numbers<[1], [0], [0], [1], [0, 0, 1, 1], [], []>} : vector<1x32xf32>, vector<32x16xf32>, vector<1x16xf32> -> vector<1x16xf32>
    %c1_22 = arith.constant 1 : index
    %c512_23 = arith.constant 512 : index
    %66 = vector.load %arg5[%c1_22, %c512_23] : memref<2x640xf32, #tpu.memory_space<vmem>>, vector<1x16xf32>
    %67 = arith.addf %65, %66 : vector<1x16xf32>
    %c0_24 = arith.constant 0 : index
    %c0_25 = arith.constant 0 : index
    %68 = vector.load %arg7[%c0_24, %c0_25] : memref<1x32xf32, #tpu.memory_space<vmem>>, vector<1x32xf32>
    tpu.vector_store %arg7[%c0_24, %c0_25], %63 {strides = array<i32>} : memref<1x32xf32, #tpu.memory_space<vmem>>, vector<1x32xf32>,
    %cst_26 = arith.constant 0.000000e+00 : f32
    %69 = vector.broadcast %cst_26 : f32 to vector<1x8x128xf32>
    %c0_27 = arith.constant 0 : index
    %c0_28 = arith.constant 0 : index
    %c0_29 = arith.constant 0 : index
    %70 = vector.load %arg6[%c0_27, %c0_28, %c0_29] : memref<1x8x128xf32, #tpu.memory_space<vmem>>, vector<1x8x128xf32>
    tpu.vector_store %arg6[%c0_27, %c0_28, %c0_29], %69 {strides = array<i32>} : memref<1x8x128xf32, #tpu.memory_space<vmem>>, vector<1x8x128xf32>,
    %71 = vector.shape_cast %67 : vector<1x16xf32> to vector<1x1x16xf32>
    %c0_30 = arith.constant 0 : index
    %c0_31 = arith.constant 0 : index
    %c0_32 = arith.constant 0 : index
    %72 = vector.load %arg6[%c0_30, %c0_31, %c0_32] : memref<1x8x128xf32, #tpu.memory_space<vmem>>, vector<1x1x16xf32>
    tpu.vector_store %arg6[%c0_30, %c0_31, %c0_32], %71 {strides = array<i32>} : memref<1x8x128xf32, #tpu.memory_space<vmem>>, vector<1x1x16xf32>,
    %73 = vector.shape_cast %63 : vector<1x32xf32> to vector<1x1x32xf32>
    %c0_33 = arith.constant 0 : index
    %c1_34 = arith.constant 1 : index
    %c0_35 = arith.constant 0 : index
    %74 = vector.load %arg6[%c0_33, %c1_34, %c0_35] : memref<1x8x128xf32, #tpu.memory_space<vmem>>, vector<1x1x32xf32>
    tpu.vector_store %arg6[%c0_33, %c1_34, %c0_35], %73 {strides = array<i32>} : memref<1x8x128xf32, #tpu.memory_space<vmem>>, vector<1x1x32xf32>,
    %75 = vector.shape_cast %25 : vector<1x10xf32> to vector<1x1x10xf32>
    %c0_36 = arith.constant 0 : index
    %c2 = arith.constant 2 : index
    %c0_37 = arith.constant 0 : index
    %76 = vector.load %arg6[%c0_36, %c2, %c0_37] : memref<1x8x128xf32, #tpu.memory_space<vmem>>, vector<1x1x10xf32>
    tpu.vector_store %arg6[%c0_36, %c2, %c0_37], %75 {strides = array<i32>} : memref<1x8x128xf32, #tpu.memory_space<vmem>>, vector<1x1x10xf32>,
    return
  }
  func.func @transform_0(%arg0: i32, %arg1: memref<4xi32, #tpu.memory_space<smem>>) -> (i32, i32) {
    %c0_i32 = arith.constant 0 : i32
    %c0_i32_0 = arith.constant 0 : i32
    %c0_i32_1 = arith.constant 0 : i32
    return %c0_i32, %c0_i32_0 : i32, i32
  }
  func.func @transform_1(%arg0: i32, %arg1: memref<4xi32, #tpu.memory_space<smem>>) -> (i32, i32) {
    %c0_i32 = arith.constant 0 : i32
    %c0_i32_0 = arith.constant 0 : i32
    %c0_i32_1 = arith.constant 0 : i32
    return %c0_i32, %c0_i32_0 : i32, i32
  }
  func.func @transform_2(%arg0: i32, %arg1: memref<4xi32, #tpu.memory_space<smem>>) -> (i32, i32) {
    %c0_i32 = arith.constant 0 : i32
    %c0_i32_0 = arith.constant 0 : i32
    %c0_i32_1 = arith.constant 0 : i32
    return %c0_i32, %c0_i32_0 : i32, i32
  }
  func.func @transform_3(%arg0: i32, %arg1: memref<4xi32, #tpu.memory_space<smem>>) -> (i32, i32) {
    %c0_i32 = arith.constant 0 : i32
    %c0_i32_0 = arith.constant 0 : i32
    %c0_i32_1 = arith.constant 0 : i32
    return %c0_i32, %c0_i32_0 : i32, i32
  }
  func.func @transform_4(%arg0: i32, %arg1: memref<4xi32, #tpu.memory_space<smem>>) -> (i32, i32, i32) {
    %c0_i32 = arith.constant 0 : i32
    %c0_i32_0 = arith.constant 0 : i32
    %c0_i32_1 = arith.constant 0 : i32
    return %arg0, %c0_i32, %c0_i32_0 : i32, i32, i32
  }
}

</mosaic_0001>

<llo_original>
// kernel: attn_decoder_decode.1
$region0: #{attn_decoder_decode.1}
  #allocation0 [shape = 'u32[]', space=smem, size = 0x4, offset = 0x4, fixed_abs, tag = 'smem constant byte address 0x4 - core index']
  #allocation1 [shape = 'u32[144,128]{1,0:T(1,128)}', space=vmem, size = 0x12000, scoped, tag = 'internal scratch']
  #allocation2 [shape = 'f32[1,32]{1,0:T(1,128)}', space=vmem, size = 0x200, scoped, tag = 'scratch operand']
  #allocation3 [shape = 's32[1]{0}', space=sflag, size = 0x4, scoped, tag = 'scoped memory for attn_decoder_decode.1']
  #allocation4 [shape = 'u8[512]{0}', space=smem, size = 0x200, scoped, tag = 'prefetched SMEM operand 0']
  %s0 = inlined_call_operand.vmem [shape: s32[4], index: 0, kind: input, shape index: {}]
  %s1 = inlined_call_operand.vmem [shape: f32[1,32], index: 1, kind: input, shape index: {}]
  %s2 = inlined_call_operand.hbm [shape: f32[10,32], index: 2, kind: input, shape index: {}]
  %s3 = inlined_call_operand.hbm [shape: f32[96,640], index: 3, kind: input, shape index: {}]
  %s4 = inlined_call_operand.vmem [shape: f32[2,640], index: 4, kind: input, shape index: {}]
  %s5 = inlined_call_operand.vmem [shape: f32[4,8,128], index: 5, kind: output, shape index: {}]
  %s6 = sld [smem:[#allocation0]]
  $region61: #{attn_decoder_decode.1} parent=0
    _
  %s8 = ssub.s32 1, %s6
  %s9 = scalar_select 0, %s8, %s6
  %s10 = sshll.u32 %s0, 4
  %s11 = int_to_ptr.vmem [resolvable:$true] %s10
  %13 = dma.vmem_to_smem %s11, 16, [#allocation4], [#allocation3]
  %14 = dma.done [#allocation3], 16
  %15 = sfence
  $region1: #{attn_decoder_decode.1} parent=0
    #allocation5 [shape = 'u8[8192]{0}', space=vmem, size = 0x2000, scoped, tag = 'input window, operand 2, single buffered']
    #allocation6 [shape = 's32[2]{0}', space=sflag, size = 0x8, scoped, tag = 'scoped memory for attn_decoder_decode.1']
    #allocation7 [shape = 'u8[245760]{0}', space=vmem, size = 0x3c000, scoped, tag = 'input window, operand 3, single buffered']
    #allocation8 [shape = 's32[1]{0}', space=sflag, size = 0x4, scoped, tag = 'scoped memory for attn_decoder_decode.1']
    %16 = vsyncpa [#allocation6], 0
    %17 = vsyncpa [#allocation8], 0
    loop: start=0, step=1, limit=6
    $region2: #{attn_decoder_decode.1} parent=1 // loop_pre_header
      _
    $region3: #{attn_decoder_decode.1} parent=1 // loop_header
      %s19 = sphi 0, %s23
      %p20 = scmp.ge.s32.totalorder %s19, 6
      %s27 = sphi 0, %s27
      %s29 = sphi 0, %s27
      %s30 = sphi 0, %s29
      %s44 = sphi 0, %s30
      %s48 = sphi 0, %s48
      %s50 = sphi 0, %s48
      %s51 = sphi 0, %s50
      %s65 = sphi 0, %s51
      %s69 = sphi 0, %s69
      %s71 = sphi 0, %s69
      %s72 = sphi 0, %s71
      %s86 = sphi 0, %s72
      %s90 = sphi 0, %s90
      %s92 = sphi 0, %s90
      %s93 = sphi 0, %s92
      %s107 = sphi 0, %s93
      %s113 = sphi 0, %s115
      %s116 = sphi 0, %s113
      %s117 = sphi 0, %s116
      %s133 = sphi 0, %s117
    $region4: #{attn_decoder_decode.1} parent=1 // loop_header_branch
      %22 = sbr.rel (%p20) target = $region8
    $region5: #{attn_decoder_decode.1} parent=1 // loop_body
      %s24 = ssub.s32 %s19, 1
      %s25 = ssub.s32 %s19, 2
      %s26 = sadd.s32 %s19, 1
      %s28 = sadd.s32 %s27, 1
      %p31 = scmp.eq.s32.totalorder %s19, 3
      %p32 = scmp.ne.s32.totalorder %s27, %s29
      %p33 = scmp.eq.s32.totalorder %s19, 0
      %p34 = por %p32, %p33
      %p35 = scmp.ne.s32.totalorder %s27, %s29
      %p36 = scmp.eq.s32.totalorder %s24, 3
      %p37 = por %p35, %p36
      %p38 = scmp.ne.s32.totalorder %s29, %s30
      %p39 = scmp.eq.s32.totalorder %s24, 0
      %p40 = por %p38, %p39
      %p41 = scmp.ne.s32.totalorder %s29, %s30
      %p42 = scmp.eq.s32.totalorder %s25, 3
      %p43 = por %p41, %p42
      %p45 = scmp.ne.s32.totalorder %s30, %s44
      %p46 = scmp.eq.s32.totalorder %s25, 0
      %p47 = por %p45, %p46
      %s49 = sadd.s32 %s48, 1
      %p52 = scmp.eq.s32.totalorder %s19, 3
      %p53 = scmp.ne.s32.totalorder %s48, %s50
      %p54 = scmp.eq.s32.totalorder %s19, 0
      %p55 = por %p53, %p54
      %p56 = scmp.ne.s32.totalorder %s48, %s50
      %p57 = scmp.eq.s32.totalorder %s24, 3
      %p58 = por %p56, %p57
      %p59 = scmp.ne.s32.totalorder %s50, %s51
      %p60 = scmp.eq.s32.totalorder %s24, 0
      %p61 = por %p59, %p60
      %p62 = scmp.ne.s32.totalorder %s50, %s51
      %p63 = scmp.eq.s32.totalorder %s25, 3
      %p64 = por %p62, %p63
      %p66 = scmp.ne.s32.totalorder %s51, %s65
      %p67 = scmp.eq.s32.totalorder %s25, 0
      %p68 = por %p66, %p67
      %s70 = sadd.s32 %s69, 1
      %p73 = scmp.eq.s32.totalorder %s19, 3
      %p74 = scmp.ne.s32.totalorder %s69, %s71
      %p75 = scmp.eq.s32.totalorder %s19, 0
      %p76 = por %p74, %p75
      %p77 = scmp.ne.s32.totalorder %s69, %s71
      %p78 = scmp.eq.s32.totalorder %s24, 3
      %p79 = por %p77, %p78
      %p80 = scmp.ne.s32.totalorder %s71, %s72
      %p81 = scmp.eq.s32.totalorder %s24, 0
      %p82 = por %p80, %p81
      %p83 = scmp.ne.s32.totalorder %s71, %s72
      %p84 = scmp.eq.s32.totalorder %s25, 3
      %p85 = por %p83, %p84
      %p87 = scmp.ne.s32.totalorder %s72, %s86
      %p88 = scmp.eq.s32.totalorder %s25, 0
      %p89 = por %p87, %p88
      %s91 = sadd.s32 %s90, 1
      %p94 = scmp.eq.s32.totalorder %s19, 3
      %p95 = scmp.ne.s32.totalorder %s90, %s92
      %p96 = scmp.eq.s32.totalorder %s19, 0
      %p97 = por %p95, %p96
      %p98 = scmp.ne.s32.totalorder %s90, %s92
      %p99 = scmp.eq.s32.totalorder %s24, 3
      %p100 = por %p98, %p99
      %p101 = scmp.ne.s32.totalorder %s92, %s93
      %p102 = scmp.eq.s32.totalorder %s24, 0
      %p103 = por %p101, %p102
      %p104 = scmp.ne.s32.totalorder %s92, %s93
      %p105 = scmp.eq.s32.totalorder %s25, 3
      %p106 = por %p104, %p105
      %p108 = scmp.ne.s32.totalorder %s93, %s107
      %p109 = scmp.eq.s32.totalorder %s25, 0
      %p110 = por %p108, %p109
      %s111 = ssub.s32 %s19, %s26
      %p112 = scmp.eq.s32.totalorder %s111, 0
      %s114 = sadd.s32 %s113, 1
      %s115 = scalar_select %p112, %s113, %s114
      %p118 = pneg %p112
      %p119 = scmp.eq.s32.totalorder %s19, 3
      %p120 = por %p118, %p119
      %p121 = scmp.ne.s32.totalorder %s113, %s116
      %p122 = scmp.eq.s32.totalorder %s19, 0
      %p123 = por %p121, %p122
      %p124 = scmp.ne.s32.totalorder %s113, %s116
      %p125 = scmp.eq.s32.totalorder %s24, 3
      %p126 = por %p124, %p125
      %p127 = scmp.ne.s32.totalorder %s116, %s117
      %p128 = scmp.eq.s32.totalorder %s24, 0
      %p129 = por %p127, %p128
      %p130 = scmp.ne.s32.totalorder %s116, %s117
      %p131 = scmp.eq.s32.totalorder %s25, 3
      %p132 = por %p130, %p131
      %p134 = scmp.ne.s32.totalorder %s117, %s133
      %p135 = scmp.eq.s32.totalorder %s25, 0
      %p136 = por %p134, %p135
      %p137 = scmp.le.s32.totalorder 1, %s19
      %p138 = scmp.lt.s32.totalorder %s19, 5
      %p139 = pnand %p137, %p138
      %p140 = pneg %p139
      // Predicated region
      $region9: #{attn_decoder_decode.1} parent=5 // pred_check
        _
      $region10: #{attn_decoder_decode.1} parent=5 // pred_check_branch
        %142 = sbr.rel (%p139) target = $region12
      $region11: #{attn_decoder_decode.1} parent=5 // pred_region
        %s143 = ssub.s32 %s19, 1
        // Predicated region
        $region13: #{attn_decoder_decode.1} parent=11 // pred_check
          %p144 = pneg %p40
        $region14: #{attn_decoder_decode.1} parent=11 // pred_check_branch
          %146 = sbr.rel (%p144) target = $region16
        $region15: #{attn_decoder_decode.1} parent=11 // pred_region
          _
        $region16: #{attn_decoder_decode.1} parent=11 // pred_fallthru
          _
        // Predicated region
        $region17: #{attn_decoder_decode.1} parent=11 // pred_check
          %p147 = pneg %p61
        $region18: #{attn_decoder_decode.1} parent=11 // pred_check_branch
          %149 = sbr.rel (%p147) target = $region20
        $region19: #{attn_decoder_decode.1} parent=11 // pred_region
          %s151 = ssub.s32 256, 256
          %152 = vsyncadd [#allocation6], %s151
          %s153 = sshll.u32 [#allocation5], 4
          %s154 = int_to_ptr.vmem [resolvable:$true] %s153
          %159 = dma.hbm_to_vmem [thread:$0]  %s2, 256, %s154, [#allocation6], 128, 128, 8
        $region20: #{attn_decoder_decode.1} parent=11 // pred_fallthru
          _
        // Predicated region
        $region21: #{attn_decoder_decode.1} parent=11 // pred_check
          %p160 = pneg %p82
        $region22: #{attn_decoder_decode.1} parent=11 // pred_check_branch
          %162 = sbr.rel (%p160) target = $region24
        $region23: #{attn_decoder_decode.1} parent=11 // pred_region
          %s164 = ssub.s32 7680, 7680
          %165 = vsyncadd [#allocation8], %s164
          %s166 = sshll.u32 [#allocation7], 4
          %s167 = int_to_ptr.vmem [resolvable:$true] %s166
          %172 = dma.hbm_to_vmem [thread:$0]  %s3, 7680, %s167, [#allocation8], 640, 640, 40
        $region24: #{attn_decoder_decode.1} parent=11 // pred_fallthru
          _
        // Predicated region
        $region25: #{attn_decoder_decode.1} parent=11 // pred_check
          %p173 = pneg %p103
        $region26: #{attn_decoder_decode.1} parent=11 // pred_check_branch
          %175 = sbr.rel (%p173) target = $region28
        $region27: #{attn_decoder_decode.1} parent=11 // pred_region
          _
        $region28: #{attn_decoder_decode.1} parent=11 // pred_fallthru
          _
      $region12: #{attn_decoder_decode.1} parent=5 // pred_fallthru
        _
      %p176 = scmp.lt.s32.totalorder %s19, 4
      // Predicated region
      $region29: #{attn_decoder_decode.1} parent=5 // pred_check
        %p177 = pneg %p176
      $region30: #{attn_decoder_decode.1} parent=5 // pred_check_branch
        %179 = sbr.rel (%p177) target = $region32
      $region31: #{attn_decoder_decode.1} parent=5 // pred_region
        _
      $region32: #{attn_decoder_decode.1} parent=5 // pred_fallthru
        _
      %p180 = scmp.le.s32.totalorder 1, %s19
      %p181 = scmp.lt.s32.totalorder %s19, 5
      %p182 = pnand %p180, %p181
      %p183 = pneg %p182
      // Predicated region
      $region33: #{attn_decoder_decode.1} parent=5 // pred_check
        _
      $region34: #{attn_decoder_decode.1} parent=5 // pred_check_branch
        %185 = sbr.rel (%p182) target = $region36
      $region35: #{attn_decoder_decode.1} parent=5 // pred_region
        %s186 = ssub.s32 %s19, 1
        // Predicated region
        $region37: #{attn_decoder_decode.1} parent=35 // pred_check
          %p187 = pneg %p61
        $region38: #{attn_decoder_decode.1} parent=35 // pred_check_branch
          %189 = sbr.rel (%p187) target = $region40
        $region39: #{attn_decoder_decode.1} parent=35 // pred_region
          %190 = dma.done [#allocation6], 256
        $region40: #{attn_decoder_decode.1} parent=35 // pred_fallthru
          _
        // Predicated region
        $region41: #{attn_decoder_decode.1} parent=35 // pred_check
          %p191 = pneg %p82
        $region42: #{attn_decoder_decode.1} parent=35 // pred_check_branch
          %193 = sbr.rel (%p191) target = $region44
        $region43: #{attn_decoder_decode.1} parent=35 // pred_region
          %194 = dma.done [#allocation8], 7680
        $region44: #{attn_decoder_decode.1} parent=35 // pred_fallthru
          _
        %p195 = pneg %p40
        %p196 = pneg %p37
        %p197 = pneg %p61
        %p198 = pneg %p58
        %p199 = pneg %p82
        %p200 = pneg %p79
        %p201 = pneg %p103
        %p202 = pneg %p100
        %p203 = pneg %p129
        %p204 = pneg %p126
        %p205 = scmp.lt.s32.totalorder %s24, 3
        %s206 = scalar_select %p205, %s24, 3
        %s207 = smul.addr %s206, 8
        %s208 = scalar_lea.vmem %s5, %s207
        %p209 = scmp.lt.s32.totalorder %s24, 3
        %s210 = scalar_select %p209, %s24, 3
        %s211 = smul.addr %s210, 8
        %s212 = scalar_lea.vmem %s5, %s211
        %p213 = scmp.eq.s32.totalorder %s24, 0
        // Predicated region
        $region45: #{attn_decoder_decode.1} parent=35 // pred_check
          %p214 = pneg %p213
        $region46: #{attn_decoder_decode.1} parent=35 // pred_check_branch
          %216 = sbr.rel (%p214) target = $region48
        $region47: #{attn_decoder_decode.1} parent=35 // pred_region
          %v217 = vld [vmem:[%s1] sm:$0x1]
          %vm218 = vcmask 253952
          %219 = vst.msk [vmem:[#allocation2] sm:$0x1] %vm218, %v217
        $region48: #{attn_decoder_decode.1} parent=35 // pred_fallthru
          _
        %v220 = vld [vmem:[#allocation2] sm:$0x1]
        %s221 = sld [smem:[#allocation4 + %s24]]
        %v222 = vlaneseq
        %v223 = vand.u32 %v222, 127
        %v224 = vstv %s221
        %vm225 = vcmp.eq.s32.totalorder %v223, %v224
        %v226 = vsel %vm225, 1, 0
        %v227 = vcvt.s32.f32 %v226
        %v229 = vlaneseq
        %v230 = vshrl.u32 %v229, 7
        %v231 = vsub.s32 0, %v230
        %v232 = vrot.slane %v220, %v231
        %233 = vrot.lane.b32.xlu0 %v232, 32
        %v234 = vpop.permute.xlu0 %233
        %vm236 = vcmask 261120
        %v237 = vsel %vm236, %v227, %v234
        %v238 = vld [vmem:[#allocation7] sm:$0xff]
        %v239 = vld [vmem:[#allocation7 + $0x8] sm:$0xff]
        %v240 = vld [vmem:[#allocation7 + $0x10] sm:$0xff]
        %v241 = vld [vmem:[#allocation7 + $0x18] sm:$0xff]
        %v242 = vld [vmem:[#allocation7 + $0x20] sm:$0xff]
        %v243 = vld [vmem:[#allocation7 + $0x28] sm:$0xff]
        %v244 = vld [vmem:[#allocation7 + $0x30] sm:$0xff]
        %v245 = vld [vmem:[#allocation7 + $0x38] sm:$0xff]
        %v246 = vld [vmem:[#allocation7 + $0x40] sm:$0xff]
        %v247 = vld [vmem:[#allocation7 + $0x48] sm:$0xff]
        %v248 = vld [vmem:[#allocation7 + $0x50] sm:$0xff]
        %v249 = vld [vmem:[#allocation7 + $0x58] sm:$0xff]
        %v250 = vld [vmem:[#allocation7 + $0x60] sm:$0xff]
        %v251 = vld [vmem:[#allocation7 + $0x68] sm:$0xff]
        %v252 = vld [vmem:[#allocation7 + $0x70] sm:$0xff]
        %v253 = vld [vmem:[#allocation7 + $0x78] sm:$0xff]
        %v254 = vld [vmem:[#allocation7 + $0x80] sm:$0xff]
        %v255 = vld [vmem:[#allocation7 + $0x88] sm:$0xff]
        %v256 = vld [vmem:[#allocation7 + $0x90] sm:$0xff]
        %v257 = vld [vmem:[#allocation7 + $0x98] sm:$0xff]
        %v258 = vld [vmem:[#allocation7 + $0xa0] sm:$0xff]
        %v259 = vld [vmem:[#allocation7 + $0xa8] sm:$0xff]
        %v260 = vld [vmem:[#allocation7 + $0xb0] sm:$0xff]
        %v261 = vld [vmem:[#allocation7 + $0xb8] sm:$0xff]
        %v262 = vld [vmem:[#allocation7 + $0xc0] sm:$0xff]
        %v263 = vld [vmem:[#allocation7 + $0xc8] sm:$0xff]
        %v264 = vld [vmem:[#allocation7 + $0xd0] sm:$0xff]
        %v265 = vld [vmem:[#allocation7 + $0xd8] sm:$0xff]
        %v266 = vld [vmem:[#allocation7 + $0xe0] sm:$0xff]
        %v267 = vld [vmem:[#allocation7 + $0xe8] sm:$0xff]
        %v268 = vld [vmem:[#allocation7 + $0xf0] sm:$0xff]
        %v269 = vld [vmem:[#allocation7 + $0xf8] sm:$0xff]
        %v270 = vld [vmem:[#allocation7 + $0x100] sm:$0xff]
        %v271 = vld [vmem:[#allocation7 + $0x108] sm:$0xff]
        %v272 = vld [vmem:[#allocation7 + $0x110] sm:$0xff]
        %v273 = vld [vmem:[#allocation7 + $0x118] sm:$0xff]
        %v274 = vld [vmem:[#allocation7 + $0x120] sm:$0xff]
        %v275 = vld [vmem:[#allocation7 + $0x128] sm:$0xff]
        %v276 = vld [vmem:[#allocation7 + $0x130] sm:$0xff]
        %v277 = vld [vmem:[#allocation7 + $0x138] sm:$0xff]
        %v278 = vld [vmem:[%s4] ss:$2 sm:$0x1f]
        %v280 = vlaneseq
        %v281 = vshrl.u32 %v280, 7
        %v282 = vsub.s32 0, %v281
        %v283 = vrot.slane %v278, %v282
        %v284 = vlaneseq
        %v285 = vshrl.u32 %v284, 7
        %v286 = vsub.s32 1, %v285
        %v287 = vrot.slane %v278, %v286
        %v288 = vlaneseq
        %v289 = vshrl.u32 %v288, 7
        %v290 = vsub.s32 2, %v289
        %v291 = vrot.slane %v278, %v290
        %v292 = vlaneseq
        %v293 = vshrl.u32 %v292, 7
        %v294 = vsub.s32 3, %v293
        %v295 = vrot.slane %v278, %v294
        %v296 = vlaneseq
        %v297 = vshrl.u32 %v296, 7
        %v298 = vsub.s32 4, %v297
        %v299 = vrot.slane %v278, %v298
        %vm305 = vcmask 523264
        %v307 = vsel %vm305, %v237, 0
        %309 = vmatprep.subr.mxu0 %v239
        %310 = vmatpush1.msra.mxu0 %v238
        %311 = vmatprep.subr.mxu0 %v244
        %312 = vmatpush1.msra.mxu0 %v243
        %313 = vmatprep.subr.mxu0 %v249
        %314 = vmatpush1.msra.mxu0 %v248
        %315 = vmatprep.subr.mxu0 %v254
        %316 = vmatpush1.msra.mxu0 %v253
        %317 = vmatprep.subr.mxu0 %v259
        %318 = vmatpush1.msra.mxu0 %v258
        %319 = vmatprep.subr.mxu0 %v264
        %320 = vmatpush1.msra.mxu0 %v263
        %321 = vmatprep.subr.mxu0 %v269
        %322 = vmatpush1.msra.mxu0 %v268
        %323 = vmatprep.subr.mxu0 %v274
        %324 = vmatpush1.msra.mxu0 %v273
        %325 = vmatprep.subr.mxu0 0.0
        %326 = vmatpush1.msra.mxu0 0.0
        %327 = vmatprep.subr.mxu0 0.0
        %328 = vmatpush1.msra.mxu0 0.0
        %329 = vmatprep.subr.mxu0 0.0
        %330 = vmatpush1.msra.mxu0 0.0
        %331 = vmatprep.subr.mxu0 0.0
        %332 = vmatpush1.msra.mxu0 0.0
        %333 = vmatprep.subr.mxu0 0.0
        %334 = vmatpush1.msra.mxu0 0.0
        %335 = vmatprep.subr.mxu0 0.0
        %336 = vmatpush1.msra.mxu0 0.0
        %337 = vmatprep.subr.mxu0 0.0
        %338 = vmatpush1.msra.mxu0 0.0
        %339 = vmatprep.subr.mxu0 0.0
        %340 = vmatpush1.msra.mxu0 0.0
        %341 = vmatprep.subr.mxu0 0.0
        %342 = vmatpush1.msra.mxu0 0.0
        %343 = vmatprep.subr.mxu0 0.0
        %344 = vmatpush1.msra.mxu0 0.0
        %345 = vmatprep.subr.mxu0 0.0
        %346 = vmatpush1.msra.mxu0 0.0
        %347 = vmatprep.subr.mxu0 0.0
        %348 = vmatpush1.msra.mxu0 0.0
        %349 = vmatprep.subr.mxu0 0.0
        %350 = vmatpush1.msra.mxu0 0.0
        %351 = vmatprep.subr.mxu0 0.0
        %352 = vmatpush1.msra.mxu0 0.0
        %353 = vmatprep.subr.mxu0 0.0
        %354 = vmatpush1.msra.mxu0 0.0
        %355 = vmatprep.subr.mxu0 0.0
        %356 = vmatpush1.msra.mxu0 0.0
        %357 = vmatprep.subr.mxu0 0.0
        %358 = vmatpush1.msra.mxu0 0.0
        %359 = vmatprep.subr.mxu0 0.0
        %360 = vmatpush1.msra.mxu0 0.0
        %361 = vmatprep.subr.mxu0 0.0
        %362 = vmatpush1.msra.mxu0 0.0
        %363 = vmatprep.subr.mxu0 0.0
        %364 = vmatpush1.msra.mxu0 0.0
        %365 = vmatprep.subr.mxu0 0.0
        %366 = vmatpush1.msra.mxu0 0.0
        %367 = vmatprep.subr.mxu0 0.0
        %368 = vmatpush1.msra.mxu0 0.0
        %369 = vmatprep.subr.mxu0 0.0
        %370 = vmatpush1.msra.mxu0 0.0
        %371 = vmatprep.subr.mxu0 0.0
        %372 = vmatpush1.msra.mxu0 0.0
        %373 = vmatprep.mubr.f32.mxu0 0.0
        %374 = vmatmul.mubr.f32.gmra.mrb[0].mxu0 %v307
        %v375 = vpop.f32.mrb[0].mxu0
        %v376 = vadd.f32 %v283, %v375
        %v377 = vpop.f32.mrb[0].mxu0
        %v378 = vadd.f32 %v287, %v377
        %379 = vdwg.mxu0
        %380 = vmatprep.subr.mxu0 %v241
        %381 = vmatpush1.msra.mxu0 %v240
        %382 = vmatprep.subr.mxu0 %v246
        %383 = vmatpush1.msra.mxu0 %v245
        %384 = vmatprep.subr.mxu0 %v251
        %385 = vmatpush1.msra.mxu0 %v250
        %386 = vmatprep.subr.mxu0 %v256
        %387 = vmatpush1.msra.mxu0 %v255
        %388 = vmatprep.subr.mxu0 %v261
        %389 = vmatpush1.msra.mxu0 %v260
        %390 = vmatprep.subr.mxu0 %v266
        %391 = vmatpush1.msra.mxu0 %v265
        %392 = vmatprep.subr.mxu0 %v271
        %393 = vmatpush1.msra.mxu0 %v270
        %394 = vmatprep.subr.mxu0 %v276
        %395 = vmatpush1.msra.mxu0 %v275
        %396 = vmatprep.subr.mxu0 0.0
        %397 = vmatpush1.msra.mxu0 0.0
        %398 = vmatprep.subr.mxu0 0.0
        %399 = vmatpush1.msra.mxu0 0.0
        %400 = vmatprep.subr.mxu0 0.0
        %401 = vmatpush1.msra.mxu0 0.0
        %402 = vmatprep.subr.mxu0 0.0
        %403 = vmatpush1.msra.mxu0 0.0
        %404 = vmatprep.subr.mxu0 0.0
        %405 = vmatpush1.msra.mxu0 0.0
        %406 = vmatprep.subr.mxu0 0.0
        %407 = vmatpush1.msra.mxu0 0.0
        %408 = vmatprep.subr.mxu0 0.0
        %409 = vmatpush1.msra.mxu0 0.0
        %410 = vmatprep.subr.mxu0 0.0
        %411 = vmatpush1.msra.mxu0 0.0
        %412 = vmatprep.subr.mxu0 0.0
        %413 = vmatpush1.msra.mxu0 0.0
        %414 = vmatprep.subr.mxu0 0.0
        %415 = vmatpush1.msra.mxu0 0.0
        %416 = vmatprep.subr.mxu0 0.0
        %417 = vmatpush1.msra.mxu0 0.0
        %418 = vmatprep.subr.mxu0 0.0
        %419 = vmatpush1.msra.mxu0 0.0
        %420 = vmatprep.subr.mxu0 0.0
        %421 = vmatpush1.msra.mxu0 0.0
        %422 = vmatprep.subr.mxu0 0.0
        %423 = vmatpush1.msra.mxu0 0.0
        %424 = vmatprep.subr.mxu0 0.0
        %425 = vmatpush1.msra.mxu0 0.0
        %426 = vmatprep.subr.mxu0 0.0
        %427 = vmatpush1.msra.mxu0 0.0
        %428 = vmatprep.subr.mxu0 0.0
        %429 = vmatpush1.msra.mxu0 0.0
        %430 = vmatprep.subr.mxu0 0.0
        %431 = vmatpush1.msra.mxu0 0.0
        %432 = vmatprep.subr.mxu0 0.0
        %433 = vmatpush1.msra.mxu0 0.0
        %434 = vmatprep.subr.mxu0 0.0
        %435 = vmatpush1.msra.mxu0 0.0
        %436 = vmatprep.subr.mxu0 0.0
        %437 = vmatpush1.msra.mxu0 0.0
        %438 = vmatprep.subr.mxu0 0.0
        %439 = vmatpush1.msra.mxu0 0.0
        %440 = vmatprep.subr.mxu0 0.0
        %441 = vmatpush1.msra.mxu0 0.0
        %442 = vmatprep.subr.mxu0 0.0
        %443 = vmatpush1.msra.mxu0 0.0
        %444 = vmatprep.mubr.f32.mxu0 0.0
        %445 = vmatmul.mubr.f32.gmra.mrb[0].mxu0 %v307
        %v446 = vpop.f32.mrb[0].mxu0
        %v447 = vadd.f32 %v291, %v446
        %v448 = vpop.f32.mrb[0].mxu0
        %v449 = vadd.f32 %v295, %v448
        %450 = vdwg.mxu0
        %451 = vmatprep.subr.mxu0 0.0
        %452 = vmatpush1.msra.mxu0 %v242
        %453 = vmatprep.subr.mxu0 0.0
        %454 = vmatpush1.msra.mxu0 %v247
        %455 = vmatprep.subr.mxu0 0.0
        %456 = vmatpush1.msra.mxu0 %v252
        %457 = vmatprep.subr.mxu0 0.0
        %458 = vmatpush1.msra.mxu0 %v257
        %459 = vmatprep.subr.mxu0 0.0
        %460 = vmatpush1.msra.mxu0 %v262
        %461 = vmatprep.subr.mxu0 0.0
        %462 = vmatpush1.msra.mxu0 %v267
        %463 = vmatprep.subr.mxu0 0.0
        %464 = vmatpush1.msra.mxu0 %v272
        %465 = vmatprep.subr.mxu0 0.0
        %466 = vmatpush1.msra.mxu0 %v277
        %467 = vmatprep.subr.mxu0 0.0
        %468 = vmatpush1.msra.mxu0 0.0
        %469 = vmatprep.subr.mxu0 0.0
        %470 = vmatpush1.msra.mxu0 0.0
        %471 = vmatprep.subr.mxu0 0.0
        %472 = vmatpush1.msra.mxu0 0.0
        %473 = vmatprep.subr.mxu0 0.0
        %474 = vmatpush1.msra.mxu0 0.0
        %475 = vmatprep.subr.mxu0 0.0
        %476 = vmatpush1.msra.mxu0 0.0
        %477 = vmatprep.subr.mxu0 0.0
        %478 = vmatpush1.msra.mxu0 0.0
        %479 = vmatprep.subr.mxu0 0.0
        %480 = vmatpush1.msra.mxu0 0.0
        %481 = vmatprep.subr.mxu0 0.0
        %482 = vmatpush1.msra.mxu0 0.0
        %483 = vmatprep.subr.mxu0 0.0
        %484 = vmatpush1.msra.mxu0 0.0
        %485 = vmatprep.subr.mxu0 0.0
        %486 = vmatpush1.msra.mxu0 0.0
        %487 = vmatprep.subr.mxu0 0.0
        %488 = vmatpush1.msra.mxu0 0.0
        %489 = vmatprep.subr.mxu0 0.0
        %490 = vmatpush1.msra.mxu0 0.0
        %491 = vmatprep.subr.mxu0 0.0
        %492 = vmatpush1.msra.mxu0 0.0
        %493 = vmatprep.subr.mxu0 0.0
        %494 = vmatpush1.msra.mxu0 0.0
        %495 = vmatprep.subr.mxu0 0.0
        %496 = vmatpush1.msra.mxu0 0.0
        %497 = vmatprep.subr.mxu0 0.0
        %498 = vmatpush1.msra.mxu0 0.0
        %499 = vmatprep.subr.mxu0 0.0
        %500 = vmatpush1.msra.mxu0 0.0
        %501 = vmatprep.subr.mxu0 0.0
        %502 = vmatpush1.msra.mxu0 0.0
        %503 = vmatprep.subr.mxu0 0.0
        %504 = vmatpush1.msra.mxu0 0.0
        %505 = vmatprep.subr.mxu0 0.0
        %506 = vmatpush1.msra.mxu0 0.0
        %507 = vmatprep.subr.mxu0 0.0
        %508 = vmatpush1.msra.mxu0 0.0
        %509 = vmatprep.subr.mxu0 0.0
        %510 = vmatpush1.msra.mxu0 0.0
        %511 = vmatprep.subr.mxu0 0.0
        %512 = vmatpush1.msra.mxu0 0.0
        %513 = vmatprep.subr.mxu0 0.0
        %514 = vmatpush1.msra.mxu0 0.0
        %515 = vmatprep.mubr.f32.mxu0 0.0
        %516 = vmatmul.mubr.f32.gmra.mrb[0].mxu0 %v307
        %v517 = vpop.f32.mrb[0].mxu0
        %v518 = vadd.f32 %v299, %v517
        %v519 = vpop.f32.mrb[0].mxu0
        %520 = vdwg.mxu0
        %vm521 = vcmask 73728
        %v522 = vsel %vm521, %v376, -inf
        %523 = vmax.xlane.f32.xlu0 %v522
        %v524 = vpop.xlane.xlu0 %523
        %v525 = vsub.f32 %v376, %v524
        %v526 = vmul.f32 %v525, 1.442695
        %v527 = vpow.pop %v526
        %v528 = vsel %vm521, %v527, 0.0
        %529 = vadd.xlane.f32.xlu0 %v528
        %v530 = vpop.xlane.xlu0 %529
        %v531 = vrcp.pop %v530
        %v532 = vmul.f32 %v527, %v531
        %v533 = vld [vmem:[#allocation5] sm:$0xff]
        %v534 = vld [vmem:[#allocation5 + $0x8] sm:$0x3]
        %vm535 = vcmask 80896
        %v537 = vsel %vm535, %v532, 0
        %vm539 = vcmask 1041408
        %v541 = vsel %vm539, %v534, 0
        %543 = vmatprep.subr.mxu0 0.0
        %544 = vmatpush1.msra.mxu0 %v533
        %545 = vmatprep.subr.mxu0 0.0
        %546 = vmatpush1.msra.mxu0 %v541
        %547 = vmatprep.subr.mxu0 0.0
        %548 = vmatpush1.msra.mxu0 0.0
        %549 = vmatprep.subr.mxu0 0.0
        %550 = vmatpush1.msra.mxu0 0.0
        %551 = vmatprep.subr.mxu0 0.0
        %552 = vmatpush1.msra.mxu0 0.0
        %553 = vmatprep.subr.mxu0 0.0
        %554 = vmatpush1.msra.mxu0 0.0
        %555 = vmatprep.subr.mxu0 0.0
        %556 = vmatpush1.msra.mxu0 0.0
        %557 = vmatprep.subr.mxu0 0.0
        %558 = vmatpush1.msra.mxu0 0.0
        %559 = vmatprep.subr.mxu0 0.0
        %560 = vmatpush1.msra.mxu0 0.0
        %561 = vmatprep.subr.mxu0 0.0
        %562 = vmatpush1.msra.mxu0 0.0
        %563 = vmatprep.subr.mxu0 0.0
        %564 = vmatpush1.msra.mxu0 0.0
        %565 = vmatprep.subr.mxu0 0.0
        %566 = vmatpush1.msra.mxu0 0.0
        %567 = vmatprep.subr.mxu0 0.0
        %568 = vmatpush1.msra.mxu0 0.0
        %569 = vmatprep.subr.mxu0 0.0
        %570 = vmatpush1.msra.mxu0 0.0
        %571 = vmatprep.subr.mxu0 0.0
        %572 = vmatpush1.msra.mxu0 0.0
        %573 = vmatprep.subr.mxu0 0.0
        %574 = vmatpush1.msra.mxu0 0.0
        %575 = vmatprep.subr.mxu0 0.0
        %576 = vmatpush1.msra.mxu0 0.0
        %577 = vmatprep.subr.mxu0 0.0
        %578 = vmatpush1.msra.mxu0 0.0
        %579 = vmatprep.subr.mxu0 0.0
        %580 = vmatpush1.msra.mxu0 0.0
        %581 = vmatprep.subr.mxu0 0.0
        %582 = vmatpush1.msra.mxu0 0.0
        %583 = vmatprep.subr.mxu0 0.0
        %584 = vmatpush1.msra.mxu0 0.0
        %585 = vmatprep.subr.mxu0 0.0
        %586 = vmatpush1.msra.mxu0 0.0
        %587 = vmatprep.subr.mxu0 0.0
        %588 = vmatpush1.msra.mxu0 0.0
        %589 = vmatprep.subr.mxu0 0.0
        %590 = vmatpush1.msra.mxu0 0.0
        %591 = vmatprep.subr.mxu0 0.0
        %592 = vmatpush1.msra.mxu0 0.0
        %593 = vmatprep.subr.mxu0 0.0
        %594 = vmatpush1.msra.mxu0 0.0
        %595 = vmatprep.subr.mxu0 0.0
        %596 = vmatpush1.msra.mxu0 0.0
        %597 = vmatprep.subr.mxu0 0.0
        %598 = vmatpush1.msra.mxu0 0.0
        %599 = vmatprep.subr.mxu0 0.0
        %600 = vmatpush1.msra.mxu0 0.0
        %601 = vmatprep.subr.mxu0 0.0
        %602 = vmatpush1.msra.mxu0 0.0
        %603 = vmatprep.subr.mxu0 0.0
        %604 = vmatpush1.msra.mxu0 0.0
        %605 = vmatprep.subr.mxu0 0.0
        %606 = vmatpush1.msra.mxu0 0.0
        %607 = vmatprep.mubr.f32.mxu0 0.0
        %608 = vmatmul.mubr.f32.gmra.mrb[0].mxu0 %v537
        %v609 = vpop.f32.mrb[0].mxu0
        %v610 = vadd.f32 0.0, %v609
        %v611 = vpop.f32.mrb[0].mxu0
        %612 = vdwg.mxu0
        %v613 = vld [vmem:[#allocation7 + $0x140] sm:$0xff]
        %v614 = vld [vmem:[#allocation7 + $0x168] sm:$0xff]
        %v615 = vld [vmem:[#allocation7 + $0x190] sm:$0xff]
        %v616 = vld [vmem:[#allocation7 + $0x1b8] sm:$0xff]
        %v618 = vsel %vm236, %v610, 0
        %620 = vmatprep.subr.mxu0 0.0
        %621 = vmatpush1.msra.mxu0 %v613
        %622 = vmatprep.subr.mxu0 0.0
        %623 = vmatpush1.msra.mxu0 %v614
        %624 = vmatprep.subr.mxu0 0.0
        %625 = vmatpush1.msra.mxu0 %v615
        %626 = vmatprep.subr.mxu0 0.0
        %627 = vmatpush1.msra.mxu0 %v616
        %628 = vmatprep.subr.mxu0 0.0
        %629 = vmatpush1.msra.mxu0 0.0
        %630 = vmatprep.subr.mxu0 0.0
        %631 = vmatpush1.msra.mxu0 0.0
        %632 = vmatprep.subr.mxu0 0.0
        %633 = vmatpush1.msra.mxu0 0.0
        %634 = vmatprep.subr.mxu0 0.0
        %635 = vmatpush1.msra.mxu0 0.0
        %636 = vmatprep.subr.mxu0 0.0
        %637 = vmatpush1.msra.mxu0 0.0
        %638 = vmatprep.subr.mxu0 0.0
        %639 = vmatpush1.msra.mxu0 0.0
        %640 = vmatprep.subr.mxu0 0.0
        %641 = vmatpush1.msra.mxu0 0.0
        %642 = vmatprep.subr.mxu0 0.0
        %643 = vmatpush1.msra.mxu0 0.0
        %644 = vmatprep.subr.mxu0 0.0
        %645 = vmatpush1.msra.mxu0 0.0
        %646 = vmatprep.subr.mxu0 0.0
        %647 = vmatpush1.msra.mxu0 0.0
        %648 = vmatprep.subr.mxu0 0.0
        %649 = vmatpush1.msra.mxu0 0.0
        %650 = vmatprep.subr.mxu0 0.0
        %651 = vmatpush1.msra.mxu0 0.0
        %652 = vmatprep.subr.mxu0 0.0
        %653 = vmatpush1.msra.mxu0 0.0
        %654 = vmatprep.subr.mxu0 0.0
        %655 = vmatpush1.msra.mxu0 0.0
        %656 = vmatprep.subr.mxu0 0.0
        %657 = vmatpush1.msra.mxu0 0.0
        %658 = vmatprep.subr.mxu0 0.0
        %659 = vmatpush1.msra.mxu0 0.0
        %660 = vmatprep.subr.mxu0 0.0
        %661 = vmatpush1.msra.mxu0 0.0
        %662 = vmatprep.subr.mxu0 0.0
        %663 = vmatpush1.msra.mxu0 0.0
        %664 = vmatprep.subr.mxu0 0.0
        %665 = vmatpush1.msra.mxu0 0.0
        %666 = vmatprep.subr.mxu0 0.0
        %667 = vmatpush1.msra.mxu0 0.0
        %668 = vmatprep.subr.mxu0 0.0
        %669 = vmatpush1.msra.mxu0 0.0
        %670 = vmatprep.subr.mxu0 0.0
        %671 = vmatpush1.msra.mxu0 0.0
        %672 = vmatprep.subr.mxu0 0.0
        %673 = vmatpush1.msra.mxu0 0.0
        %674 = vmatprep.subr.mxu0 0.0
        %675 = vmatpush1.msra.mxu0 0.0
        %676 = vmatprep.subr.mxu0 0.0
        %677 = vmatpush1.msra.mxu0 0.0
        %678 = vmatprep.subr.mxu0 0.0
        %679 = vmatpush1.msra.mxu0 0.0
        %680 = vmatprep.subr.mxu0 0.0
        %681 = vmatpush1.msra.mxu0 0.0
        %682 = vmatprep.subr.mxu0 0.0
        %683 = vmatpush1.msra.mxu0 0.0
        %684 = vmatprep.mubr.f32.mxu0 0.0
        %685 = vmatmul.mubr.f32.gmra.mrb[0].mxu0 %v618
        %v686 = vpop.f32.mrb[0].mxu0
        %v687 = vadd.f32 0.0, %v686
        %v688 = vpop.f32.mrb[0].mxu0
        %689 = vdwg.mxu0
        %v690 = vadd.f32 %v378, %v687
        %v691 = vmax.f32 %v690, 0.0
        %v692 = vld [vmem:[#allocation7 + $0x148] sm:$0xff]
        %v693 = vld [vmem:[#allocation7 + $0x150] sm:$0xff]
        %v694 = vld [vmem:[#allocation7 + $0x158] sm:$0xff]
        %v695 = vld [vmem:[#allocation7 + $0x170] sm:$0xff]
        %v696 = vld [vmem:[#allocation7 + $0x178] sm:$0xff]
        %v697 = vld [vmem:[#allocation7 + $0x180] sm:$0xff]
        %v698 = vld [vmem:[#allocation7 + $0x198] sm:$0xff]
        %v699 = vld [vmem:[#allocation7 + $0x1a0] sm:$0xff]
        %v700 = vld [vmem:[#allocation7 + $0x1a8] sm:$0xff]
        %v701 = vld [vmem:[#allocation7 + $0x1c0] sm:$0xff]
        %v702 = vld [vmem:[#allocation7 + $0x1c8] sm:$0xff]
        %v703 = vld [vmem:[#allocation7 + $0x1d0] sm:$0xff]
        %s704 = scalar_lea.vmem %s4, 3
        %v705 = vld [vmem:[%s704] ss:$2 sm:$0x7]
        %v707 = vlaneseq
        %v708 = vshrl.u32 %v707, 7
        %v709 = vsub.s32 0, %v708
        %v710 = vrot.slane %v705, %v709
        %v711 = vlaneseq
        %v712 = vshrl.u32 %v711, 7
        %v713 = vsub.s32 1, %v712
        %v714 = vrot.slane %v705, %v713
        %v715 = vlaneseq
        %v716 = vshrl.u32 %v715, 7
        %v717 = vsub.s32 2, %v716
        %v718 = vrot.slane %v705, %v717
        %v723 = vsel %vm236, %v691, 0
        %725 = vmatprep.subr.mxu0 %v693
        %726 = vmatpush1.msra.mxu0 %v692
        %727 = vmatprep.subr.mxu0 %v696
        %728 = vmatpush1.msra.mxu0 %v695
        %729 = vmatprep.subr.mxu0 %v699
        %730 = vmatpush1.msra.mxu0 %v698
        %731 = vmatprep.subr.mxu0 %v702
        %732 = vmatpush1.msra.mxu0 %v701
        %733 = vmatprep.subr.mxu0 0.0
        %734 = vmatpush1.msra.mxu0 0.0
        %735 = vmatprep.subr.mxu0 0.0
        %736 = vmatpush1.msra.mxu0 0.0
        %737 = vmatprep.subr.mxu0 0.0
        %738 = vmatpush1.msra.mxu0 0.0
        %739 = vmatprep.subr.mxu0 0.0
        %740 = vmatpush1.msra.mxu0 0.0
        %741 = vmatprep.subr.mxu0 0.0
        %742 = vmatpush1.msra.mxu0 0.0
        %743 = vmatprep.subr.mxu0 0.0
        %744 = vmatpush1.msra.mxu0 0.0
        %745 = vmatprep.subr.mxu0 0.0
        %746 = vmatpush1.msra.mxu0 0.0
        %747 = vmatprep.subr.mxu0 0.0
        %748 = vmatpush1.msra.mxu0 0.0
        %749 = vmatprep.subr.mxu0 0.0
        %750 = vmatpush1.msra.mxu0 0.0
        %751 = vmatprep.subr.mxu0 0.0
        %752 = vmatpush1.msra.mxu0 0.0
        %753 = vmatprep.subr.mxu0 0.0
        %754 = vmatpush1.msra.mxu0 0.0
        %755 = vmatprep.subr.mxu0 0.0
        %756 = vmatpush1.msra.mxu0 0.0
        %757 = vmatprep.subr.mxu0 0.0
        %758 = vmatpush1.msra.mxu0 0.0
        %759 = vmatprep.subr.mxu0 0.0
        %760 = vmatpush1.msra.mxu0 0.0
        %761 = vmatprep.subr.mxu0 0.0
        %762 = vmatpush1.msra.mxu0 0.0
        %763 = vmatprep.subr.mxu0 0.0
        %764 = vmatpush1.msra.mxu0 0.0
        %765 = vmatprep.subr.mxu0 0.0
        %766 = vmatpush1.msra.mxu0 0.0
        %767 = vmatprep.subr.mxu0 0.0
        %768 = vmatpush1.msra.mxu0 0.0
        %769 = vmatprep.subr.mxu0 0.0
        %770 = vmatpush1.msra.mxu0 0.0
        %771 = vmatprep.subr.mxu0 0.0
        %772 = vmatpush1.msra.mxu0 0.0
        %773 = vmatprep.subr.mxu0 0.0
        %774 = vmatpush1.msra.mxu0 0.0
        %775 = vmatprep.subr.mxu0 0.0
        %776 = vmatpush1.msra.mxu0 0.0
        %777 = vmatprep.subr.mxu0 0.0
        %778 = vmatpush1.msra.mxu0 0.0
        %779 = vmatprep.subr.mxu0 0.0
        %780 = vmatpush1.msra.mxu0 0.0
        %781 = vmatprep.subr.mxu0 0.0
        %782 = vmatpush1.msra.mxu0 0.0
        %783 = vmatprep.subr.mxu0 0.0
        %784 = vmatpush1.msra.mxu0 0.0
        %785 = vmatprep.subr.mxu0 0.0
        %786 = vmatpush1.msra.mxu0 0.0
        %787 = vmatprep.subr.mxu0 0.0
        %788 = vmatpush1.msra.mxu0 0.0
        %789 = vmatprep.mubr.f32.mxu0 0.0
        %790 = vmatmul.mubr.f32.gmra.mrb[0].mxu0 %v723
        %v791 = vpop.f32.mrb[0].mxu0
        %v792 = vadd.f32 %v710, %v791
        %v793 = vpop.f32.mrb[0].mxu0
        %v794 = vadd.f32 %v714, %v793
        %795 = vdwg.mxu0
        %796 = vmatprep.subr.mxu0 0.0
        %797 = vmatpush1.msra.mxu0 %v694
        %798 = vmatprep.subr.mxu0 0.0
        %799 = vmatpush1.msra.mxu0 %v697
        %800 = vmatprep.subr.mxu0 0.0
        %801 = vmatpush1.msra.mxu0 %v700
        %802 = vmatprep.subr.mxu0 0.0
        %803 = vmatpush1.msra.mxu0 %v703
        %804 = vmatprep.subr.mxu0 0.0
        %805 = vmatpush1.msra.mxu0 0.0
        %806 = vmatprep.subr.mxu0 0.0
        %807 = vmatpush1.msra.mxu0 0.0
        %808 = vmatprep.subr.mxu0 0.0
        %809 = vmatpush1.msra.mxu0 0.0
        %810 = vmatprep.subr.mxu0 0.0
        %811 = vmatpush1.msra.mxu0 0.0
        %812 = vmatprep.subr.mxu0 0.0
        %813 = vmatpush1.msra.mxu0 0.0
        %814 = vmatprep.subr.mxu0 0.0
        %815 = vmatpush1.msra.mxu0 0.0
        %816 = vmatprep.subr.mxu0 0.0
        %817 = vmatpush1.msra.mxu0 0.0
        %818 = vmatprep.subr.mxu0 0.0
        %819 = vmatpush1.msra.mxu0 0.0
        %820 = vmatprep.subr.mxu0 0.0
        %821 = vmatpush1.msra.mxu0 0.0
        %822 = vmatprep.subr.mxu0 0.0
        %823 = vmatpush1.msra.mxu0 0.0
        %824 = vmatprep.subr.mxu0 0.0
        %825 = vmatpush1.msra.mxu0 0.0
        %826 = vmatprep.subr.mxu0 0.0
        %827 = vmatpush1.msra.mxu0 0.0
        %828 = vmatprep.subr.mxu0 0.0
        %829 = vmatpush1.msra.mxu0 0.0
        %830 = vmatprep.subr.mxu0 0.0
        %831 = vmatpush1.msra.mxu0 0.0
        %832 = vmatprep.subr.mxu0 0.0
        %833 = vmatpush1.msra.mxu0 0.0
        %834 = vmatprep.subr.mxu0 0.0
        %835 = vmatpush1.msra.mxu0 0.0
        %836 = vmatprep.subr.mxu0 0.0
        %837 = vmatpush1.msra.mxu0 0.0
        %838 = vmatprep.subr.mxu0 0.0
        %839 = vmatpush1.msra.mxu0 0.0
        %840 = vmatprep.subr.mxu0 0.0
        %841 = vmatpush1.msra.mxu0 0.0
        %842 = vmatprep.subr.mxu0 0.0
        %843 = vmatpush1.msra.mxu0 0.0
        %844 = vmatprep.subr.mxu0 0.0
        %845 = vmatpush1.msra.mxu0 0.0
        %846 = vmatprep.subr.mxu0 0.0
        %847 = vmatpush1.msra.mxu0 0.0
        %848 = vmatprep.subr.mxu0 0.0
        %849 = vmatpush1.msra.mxu0 0.0
        %850 = vmatprep.subr.mxu0 0.0
        %851 = vmatpush1.msra.mxu0 0.0
        %852 = vmatprep.subr.mxu0 0.0
        %853 = vmatpush1.msra.mxu0 0.0
        %854 = vmatprep.subr.mxu0 0.0
        %855 = vmatpush1.msra.mxu0 0.0
        %856 = vmatprep.subr.mxu0 0.0
        %857 = vmatpush1.msra.mxu0 0.0
        %858 = vmatprep.subr.mxu0 0.0
        %859 = vmatpush1.msra.mxu0 0.0
        %860 = vmatprep.mubr.f32.mxu0 0.0
        %861 = vmatmul.mubr.f32.gmra.mrb[0].mxu0 %v723
        %v862 = vpop.f32.mrb[0].mxu0
        %v863 = vadd.f32 %v718, %v862
        %v864 = vpop.f32.mrb[0].mxu0
        %865 = vdwg.mxu0
        %v866 = vadd.f32 %v792, %v447
        %v867 = vxor.u32 %v866, 2147483648
        %v868 = vmul.f32 %v867, 1.442695
        %v869 = vpow.pop %v868
        %v870 = vadd.f32 %v869, 1.0
        %v871 = vrcp.pop %v870
        %v872 = vmul.f32 1.0, %v871
        %v873 = vadd.f32 %v794, %v449
        %v874 = vxor.u32 %v873, 2147483648
        %v875 = vmul.f32 %v874, 1.442695
        %v876 = vpow.pop %v875
        %v877 = vadd.f32 %v876, 1.0
        %v878 = vrcp.pop %v877
        %v879 = vmul.f32 1.0, %v878
        %v880 = vmul.f32 %v872, %v518
        %v881 = vadd.f32 %v863, %v880
        %v882 = vtanh.pop %v881
        %v883 = vsub.f32 1.0, %v879
        %v884 = vmul.f32 %v883, %v882
        %v885 = vmul.f32 %v879, %v220
        %v886 = vadd.f32 %v884, %v885
        %v887 = vld [vmem:[#allocation7 + $0x160] sm:$0xff]
        %v888 = vld [vmem:[#allocation7 + $0x188] sm:$0xff]
        %v889 = vld [vmem:[#allocation7 + $0x1b0] sm:$0xff]
        %v890 = vld [vmem:[#allocation7 + $0x1d8] sm:$0xff]
        %v891 = vld [vmem:[%s4 + $0x9] sm:$0x1]
        %v893 = vsel %vm236, %v886, 0
        %895 = vmatprep.subr.mxu0 0.0
        %896 = vmatpush1.msra.mxu0 %v887
        %897 = vmatprep.subr.mxu0 0.0
        %898 = vmatpush1.msra.mxu0 %v888
        %899 = vmatprep.subr.mxu0 0.0
        %900 = vmatpush1.msra.mxu0 %v889
        %901 = vmatprep.subr.mxu0 0.0
        %902 = vmatpush1.msra.mxu0 %v890
        %903 = vmatprep.subr.mxu0 0.0
        %904 = vmatpush1.msra.mxu0 0.0
        %905 = vmatprep.subr.mxu0 0.0
        %906 = vmatpush1.msra.mxu0 0.0
        %907 = vmatprep.subr.mxu0 0.0
        %908 = vmatpush1.msra.mxu0 0.0
        %909 = vmatprep.subr.mxu0 0.0
        %910 = vmatpush1.msra.mxu0 0.0
        %911 = vmatprep.subr.mxu0 0.0
        %912 = vmatpush1.msra.mxu0 0.0
        %913 = vmatprep.subr.mxu0 0.0
        %914 = vmatpush1.msra.mxu0 0.0
        %915 = vmatprep.subr.mxu0 0.0
        %916 = vmatpush1.msra.mxu0 0.0
        %917 = vmatprep.subr.mxu0 0.0
        %918 = vmatpush1.msra.mxu0 0.0
        %919 = vmatprep.subr.mxu0 0.0
        %920 = vmatpush1.msra.mxu0 0.0
        %921 = vmatprep.subr.mxu0 0.0
        %922 = vmatpush1.msra.mxu0 0.0
        %923 = vmatprep.subr.mxu0 0.0
        %924 = vmatpush1.msra.mxu0 0.0
        %925 = vmatprep.subr.mxu0 0.0
        %926 = vmatpush1.msra.mxu0 0.0
        %927 = vmatprep.subr.mxu0 0.0
        %928 = vmatpush1.msra.mxu0 0.0
        %929 = vmatprep.subr.mxu0 0.0
        %930 = vmatpush1.msra.mxu0 0.0
        %931 = vmatprep.subr.mxu0 0.0
        %932 = vmatpush1.msra.mxu0 0.0
        %933 = vmatprep.subr.mxu0 0.0
        %934 = vmatpush1.msra.mxu0 0.0
        %935 = vmatprep.subr.mxu0 0.0
        %936 = vmatpush1.msra.mxu0 0.0
        %937 = vmatprep.subr.mxu0 0.0
        %938 = vmatpush1.msra.mxu0 0.0
        %939 = vmatprep.subr.mxu0 0.0
        %940 = vmatpush1.msra.mxu0 0.0
        %941 = vmatprep.subr.mxu0 0.0
        %942 = vmatpush1.msra.mxu0 0.0
        %943 = vmatprep.subr.mxu0 0.0
        %944 = vmatpush1.msra.mxu0 0.0
        %945 = vmatprep.subr.mxu0 0.0
        %946 = vmatpush1.msra.mxu0 0.0
        %947 = vmatprep.subr.mxu0 0.0
        %948 = vmatpush1.msra.mxu0 0.0
        %949 = vmatprep.subr.mxu0 0.0
        %950 = vmatpush1.msra.mxu0 0.0
        %951 = vmatprep.subr.mxu0 0.0
        %952 = vmatpush1.msra.mxu0 0.0
        %953 = vmatprep.subr.mxu0 0.0
        %954 = vmatpush1.msra.mxu0 0.0
        %955 = vmatprep.subr.mxu0 0.0
        %956 = vmatpush1.msra.mxu0 0.0
        %957 = vmatprep.subr.mxu0 0.0
        %958 = vmatpush1.msra.mxu0 0.0
        %959 = vmatprep.mubr.f32.mxu0 0.0
        %960 = vmatmul.mubr.f32.gmra.mrb[0].mxu0 %v893
        %v961 = vpop.f32.mrb[0].mxu0
        %v962 = vadd.f32 %v891, %v961
        %v963 = vpop.f32.mrb[0].mxu0
        %964 = vdwg.mxu0
        %vm965 = vcmask 253952
        %966 = vst.msk [vmem:[#allocation2] sm:$0x1] %vm965, %v886
        %967 = vst [vmem:[%s212] sm:$0xff] 0.0
        %vm968 = vcmask 122880
        %969 = vst.msk [vmem:[%s212] sm:$0x1] %vm968, %v962
        %970 = vst.msk [vmem:[%s212 + $0x1] sm:$0x1] %vm965, %v886
        %971 = vst.msk [vmem:[%s212 + $0x2] sm:$0x1] %vm521, %v532
        %p972 = scmp.lt.s32.totalorder %s24, 3
        %s973 = scalar_select %p972, %s24, 3
        %s974 = smul.addr %s973, 8
        %s975 = scalar_lea.vmem %s5, %s974
        // Predicated region
        $region49: #{attn_decoder_decode.1} parent=35 // pred_check
          %p976 = pneg %p126
        $region50: #{attn_decoder_decode.1} parent=35 // pred_check_branch
          %978 = sbr.rel (%p976) target = $region52
        $region51: #{attn_decoder_decode.1} parent=35 // pred_region
          _
        $region52: #{attn_decoder_decode.1} parent=35 // pred_fallthru
          _
      $region36: #{attn_decoder_decode.1} parent=5 // pred_fallthru
        _
      %p979 = scmp.le.s32.totalorder 2, %s19
      // Predicated region
      $region53: #{attn_decoder_decode.1} parent=5 // pred_check
        %p980 = pneg %p979
      $region54: #{attn_decoder_decode.1} parent=5 // pred_check_branch
        %982 = sbr.rel (%p980) target = $region56
      $region55: #{attn_decoder_decode.1} parent=5 // pred_region
        %s983 = ssub.s32 %s19, 2
        // Predicated region
        $region57: #{attn_decoder_decode.1} parent=55 // pred_check
          %p984 = pneg %p132
        $region58: #{attn_decoder_decode.1} parent=55 // pred_check_branch
          %986 = sbr.rel (%p984) target = $region60
        $region59: #{attn_decoder_decode.1} parent=55 // pred_region
          %p987 = scmp.lt.s32.totalorder %s25, 3
          %s988 = scalar_select %p987, %s25, 3
          %s989 = smul.addr %s988, 8
          %s990 = scalar_lea.vmem %s5, %s989
        $region60: #{attn_decoder_decode.1} parent=55 // pred_fallthru
          _
      $region56: #{attn_decoder_decode.1} parent=5 // pred_fallthru
        _
    $region6: #{attn_decoder_decode.1} parent=1 // loop_footer
      %s23 = sadd.s32 1, %s19
    $region7: #{attn_decoder_decode.1} parent=1 // loop_footer_branch
      %18 = sbr.rel target = $region3
    $region8: #{attn_decoder_decode.1} parent=1 // loop_exit
      _
    %991 = vsyncpa [#allocation6], 1
    %s992 = scalar_lea.sflag [#allocation6], 1
    %993 = vsyncpa %s992, 1
    %994 = vsyncpa [#allocation8], 1

</llo_original>
